<compile_context>
chip_gen: v6e
topology: v6e:2x2x1
jax: 0.10.0
libtpu: 0.0.40
codegen_flags: <defaults>
</compile_context>

<pallas_src>
import functools

import jax
import jax.numpy as jnp
from jax.experimental import pallas as pl
from jax.experimental.pallas import tpu as pltpu


def _disc_kernel(xs_ref, xt_ref, w1_ref, b1_ref, w2_ref, b2_ref, w3_ref, b3_ref,
                 out_ref, acc_ref, *, tiles_s, half_tiles, tile_m, ns, nt):
    c = pl.program_id(0)              # core (parallel) index
    j = pl.program_id(1)              # row-tile (reduction) index within this core
    t = c * half_tiles + j            # global row-tile id

    @pl.when(j == 0)
    def _init():
        acc_ref[...] = jnp.zeros_like(acc_ref)

    is_target = t >= tiles_s          # False = source rows (label 0), True = target rows (label 1)

    # Single vsel picks the active pack tile (the inactive ref's block index is clamped in its
    # index_map, so it is not re-DMA'd while unused). Inputs are already bf16.
    x = jnp.where(is_target, xt_ref[...], xs_ref[...])

    # MLP: bf16 operands on the MXU, f32 accumulation / elementwise.
    h1 = jnp.dot(x, w1_ref[...], preferred_element_type=jnp.float32) + b1_ref[...]
    h1 = jnp.maximum(h1, 0.0)
    h2 = jnp.dot(h1.astype(jnp.bfloat16), w2_ref[...],
                 preferred_element_type=jnp.float32) + b2_ref[...]
    h2 = jnp.maximum(h2, 0.0)
    # Final (hidden -> 1) projection: VPU multiply + lane reduce. If a profile shows the
    # lane-sparse XLU/VPU epilogue binding at very large tile_m, move this onto the idle MXU.
    logits = jnp.sum(h2 * w3_ref[...], axis=-1, keepdims=True) + b3_ref[0]   # (tile_m, 1)

    # Mask rows past the true pack length (handles zero-padded / overhang tiles).
    seg_tile = jnp.where(is_target, t - tiles_s, t)
    limit = jnp.where(is_target, nt, ns)
    row = jax.lax.broadcasted_iota(jnp.int32, (tile_m, 1), 0) + seg_tile * tile_m
    valid = (row < limit).astype(jnp.float32)

    # Numerically stable BCE-with-logits; accumulate per-row sums in VMEM, reduce at finalize.
    per = (jnp.maximum(logits, 0.0) - jnp.where(is_target, logits, 0.0)
           + jnp.log1p(jnp.exp(-jnp.abs(logits))))
    acc_ref[...] += per * valid

    @pl.when(j == half_tiles - 1)
    def _finalize():
        out_ref[...] = jnp.full(out_ref.shape, jnp.sum(acc_ref[...]), dtype=jnp.float32)


def _num_tensorcores():
    # Size the leading "parallel" grid axis to the real TensorCore count: 2 only on v7x-style
    # multi-TC chips, 1 on v5e/v6e (avoids wasted masked tiles / extra partial sums).
    try:
        kind = jax.devices()[0].device_kind.lower()
        if "v7" in kind:
            return 2
    except Exception:
        pass
    return 1


def _vmem_limit_bytes():
    # ~75% of physical VMEM, capped at 96 MiB. v5e/v6e default scoped VMEM (16/32 MiB) would
    # otherwise reject large row tiles long before physical VMEM runs out.
    try:
        cap = int(pltpu.get_tpu_info().vmem_capacity_bytes)
    except Exception:
        cap = 64 * 1024 * 1024      # v7x-safe fallback
    return int(min(cap * 3 // 4, 96 * 1024 * 1024))


def _choose_tile_m(ns, nt, idim, hdim, vmem_limit):
    # Per-row VMEM bytes: 2 inputs x 2 pipeline buffers x bf16 row, f32 h1/h2 + bf16 h1,
    # logits/per, and the lane-padded (tile_m, 1) f32 accumulator.
    per_row = 2 * 2 * idim * 2 + hdim * (4 + 4 + 2) + 2 * 4 + 128 * 4
    cap = max(8, (vmem_limit // 2 // per_row) // 8 * 8)
    need = ((max(ns, nt, 1) + 7) // 8) * 8
    return int(max(8, min(2048, cap, need)))


def _pad_rows(x, tile_m):
    n = x.shape[0]
    pad = (-n) % tile_m
    if n == 0:
        pad = tile_m   # keep one fully-masked tile so clamped block indices never go negative
    return jnp.pad(x, ((0, pad), (0, 0))) if pad else x


def discriminator_forward(spack, tpack, params, *, tile_m=None):
    """Equivalent of Discriminator.forward:
       -BCEWithLogits(MLP(cat(spack, tpack)), [0]*ns + [1]*nt)  (mean reduction)."""
    w1, b1, w2, b2, w3, b3 = params            # prepared (lane-padded / bf16) params
    ns, idim = spack.shape
    nt, _ = tpack.shape
    hdim = w1.shape[1]

    vmem_limit = _vmem_limit_bytes()
    if tile_m is None:
        tile_m = _choose_tile_m(ns, nt, idim, hdim, vmem_limit)
    assert tile_m % 8 == 0, "tile_m must be a multiple of 8"

    # Stream inputs as bf16 (they feed bf16 MXU matmuls anyway): halves HBM->VMEM DMA bytes
    # and input VMEM. The cast fuses with the row-padding copy below.
    sp = _pad_rows(spack.astype(jnp.bfloat16), tile_m)
    tp = _pad_rows(tpack.astype(jnp.bfloat16), tile_m)
    tiles_s = sp.shape[0] // tile_m
    tiles_t = tp.shape[0] // tile_m
    total_tiles = tiles_s + tiles_t

    num_cores = max(1, min(_num_tensorcores(), total_tiles))
    half_tiles = (total_tiles + num_cores - 1) // num_cores

    kernel = functools.partial(_disc_kernel, tiles_s=tiles_s, half_tiles=half_tiles,
                               tile_m=tile_m, ns=ns, nt=nt)

    def s_map(c, j):   # clamp so the source ref only advances during source tiles
        return (jnp.clip(c * half_tiles + j, 0, tiles_s - 1), 0)

    def t_map(c, j):   # clamp so the target ref only advances during target tiles
        return (jnp.clip(c * half_tiles + j - tiles_s, 0, tiles_t - 1), 0)

    const = lambda c, j: (0, 0)        # resident weights / biases (fetched once)

    partials = pl.pallas_call(
        kernel,
        out_shape=jax.ShapeDtypeStruct((num_cores, 8, 128), jnp.float32),
        grid=(num_cores, half_tiles),
        in_specs=[
            pl.BlockSpec((tile_m, idim), s_map),
            pl.BlockSpec((tile_m, idim), t_map),
            pl.BlockSpec(w1.shape, const),
            pl.BlockSpec(b1.shape, const),
            pl.BlockSpec(w2.shape, const),
            pl.BlockSpec(b2.shape, const),
            pl.BlockSpec(w3.shape, const),
            pl.BlockSpec(memory_space=pltpu.MemorySpace.SMEM),   # b3 scalar
        ],
        out_specs=pl.BlockSpec((1, 8, 128), lambda c, j: (c, 0, 0)),
        scratch_shapes=[pltpu.VMEM((tile_m, 1), jnp.float32)],
        compiler_params=pltpu.CompilerParams(
            dimension_semantics=("parallel", "arbitrary"),
            vmem_limit_bytes=vmem_limit),
    )(sp, tp, w1, b1, w2, b2, w3, b3)

    return -jnp.sum(partials[:, 0, 0]) / (ns + nt)


def init_params(key, idim, odim):
    # Matches torch.nn.Linear default init U(-1/sqrt(fan_in), 1/sqrt(fan_in)); weights (in, out).
    k = jax.random.split(key, 6)
    s1 = 1.0 / jnp.sqrt(idim)
    s2 = 1.0 / jnp.sqrt(odim)
    w1 = jax.random.uniform(k[0], (idim, odim), jnp.float32, -s1, s1)
    b1 = jax.random.uniform(k[1], (odim,), jnp.float32, -s1, s1)
    w2 = jax.random.uniform(k[2], (odim, odim), jnp.float32, -s2, s2)
    b2 = jax.random.uniform(k[3], (odim,), jnp.float32, -s2, s2)
    w3 = jax.random.uniform(k[4], (odim, 1), jnp.float32, -s2, s2)
    b3 = jax.random.uniform(k[5], (1,), jnp.float32, -s2, s2)
    return (w1, b1, w2, b2, w3, b3)


def prepare_params(params):
    """Zero-pad the hidden width to a multiple of 128 (lane-dense, exact under ReLU) and
    cast MXU operands to bf16; biases and the final projection row stay f32."""
    w1, b1, w2, b2, w3, b3 = params
    _, odim = w1.shape
    p = ((odim + 127) // 128) * 128
    pad = p - odim
    w1p = jnp.pad(w1, ((0, 0), (0, pad))).astype(jnp.bfloat16)
    b1p = jnp.pad(b1, (0, pad)).reshape(1, p).astype(jnp.float32)
    w2p = jnp.pad(w2, ((0, pad), (0, pad))).astype(jnp.bfloat16)
    b2p = jnp.pad(b2, (0, pad)).reshape(1, p).astype(jnp.float32)
    w3p = jnp.pad(w3[:, 0], (0, pad)).reshape(1, p).astype(jnp.float32)
    b3p = b3.astype(jnp.float32)
    return (w1p, b1p, w2p, b2p, w3p, b3p)


def _reference(spack, tpack, raw_params):
    # Same math (bf16 matmul operands, f32 accumulation / elementwise) in plain JAX.
    w1, b1, w2, b2, w3, b3 = raw_params
    x = jnp.concatenate([spack, tpack], axis=0)
    h1 = jnp.maximum(jnp.dot(x.astype(jnp.bfloat16), w1.astype(jnp.bfloat16),
                             preferred_element_type=jnp.float32) + b1, 0.0)
    h2 = jnp.maximum(jnp.dot(h1.astype(jnp.bfloat16), w2.astype(jnp.bfloat16),
                             preferred_element_type=jnp.float32) + b2, 0.0)
    logits = h2 @ w3 + b3
    y = jnp.concatenate([jnp.zeros((spack.shape[0], 1)), jnp.ones((tpack.shape[0], 1))], 0)
    per = jnp.maximum(logits, 0.0) - logits * y + jnp.log1p(jnp.exp(-jnp.abs(logits)))
    return -jnp.mean(per)


if __name__ == "__main__":
    # TODO(synk): torch PackedSequence bookkeeping has no Pallas equivalent; inputs are treated
    # as the dense (rows, idim) .data tensors, which is all the forward pass uses.
    idim, odim = 16, 32
    ns, nt = 16, 16

    key = jax.random.PRNGKey(0)
    kp, ks, kt = jax.random.split(key, 3)
    raw_params = init_params(kp, idim, odim)
    params = prepare_params(raw_params)
    spack = jax.random.normal(ks, (ns, idim), jnp.float32)
    tpack = jax.random.normal(kt, (nt, idim), jnp.float32)

    out = discriminator_forward(spack, tpack, params)   # tile_m auto-sized
    out = jax.block_until_ready(out)

    ref = _reference(spack, tpack, raw_params)
    assert jnp.allclose(out, ref, atol=1e-4, rtol=1e-4), (out, ref)

    print("KERNEL_OK")
</pallas_src>

<mosaic_0001>
module attributes {stable_mosaic.version = 11 : i64} {
  func.func @_disc_kernel(%arg0: i32, %arg1: i32, %arg2: memref<16x16xbf16, #tpu.memory_space<vmem>>, %arg3: memref<16x16xbf16, #tpu.memory_space<vmem>>, %arg4: memref<16x128xbf16, #tpu.memory_space<vmem>>, %arg5: memref<1x128xf32, #tpu.memory_space<vmem>>, %arg6: memref<128x128xbf16, #tpu.memory_space<vmem>>, %arg7: memref<1x128xf32, #tpu.memory_space<vmem>>, %arg8: memref<1x128xf32, #tpu.memory_space<vmem>>, %arg9: memref<1xf32, #tpu.memory_space<smem>>, %arg10: memref<1x8x128xf32, #tpu.memory_space<vmem>>, %arg11: memref<16x1xf32, #tpu.memory_space<vmem>>) attributes {dimension_semantics = [#tpu.dimension_semantics<parallel>, #tpu.dimension_semantics<arbitrary>], iteration_bounds = array<i64: 1, 2>, scalar_prefetch = 0 : i64, scratch_operands = 1 : i64, tpu.core_type = #tpu.core_type<tc>, window_params = [{transform_indices = @transform_0, window_bounds = array<i64: 16, 16>}, {transform_indices = @transform_1, window_bounds = array<i64: 16, 16>}, {pipeline_mode = #tpu.pipeline_mode<synchronous>, transform_indices = @transform_2, window_bounds = array<i64: 16, 128>}, {pipeline_mode = #tpu.pipeline_mode<synchronous>, transform_indices = @transform_3, window_bounds = array<i64: 1, 128>}, {pipeline_mode = #tpu.pipeline_mode<synchronous>, transform_indices = @transform_4, window_bounds = array<i64: 128, 128>}, {pipeline_mode = #tpu.pipeline_mode<synchronous>, transform_indices = @transform_5, window_bounds = array<i64: 1, 128>}, {pipeline_mode = #tpu.pipeline_mode<synchronous>, transform_indices = @transform_6, window_bounds = array<i64: 1, 128>}, {transform_indices = @transform_7, window_bounds = array<i64: 1>}, {transform_indices = @transform_8, window_bounds = array<i64: 1, 8, 128>}]} {
    %c2_i32 = arith.constant 2 : i32
    %0 = arith.muli %arg0, %c2_i32 : i32
    %1 = arith.addi %0, %arg1 : i32
    %c0_i32 = arith.constant 0 : i32
    %2 = arith.cmpi eq, %arg1, %c0_i32 : i32
    %3 = arith.extui %2 : i1 to i32
    %c0_i32_0 = arith.constant 0 : i32
    %4 = arith.cmpi ne, %3, %c0_i32_0 : i32
    scf.if %4 {
      %cst_31 = arith.constant 0.000000e+00 : f32
      %61 = vector.broadcast %cst_31 : f32 to vector<16x1xf32>
      %c0_32 = arith.constant 0 : index
      %c0_33 = arith.constant 0 : index
      %62 = vector.load %arg11[%c0_32, %c0_33] : memref<16x1xf32, #tpu.memory_space<vmem>>, vector<16x1xf32>
      tpu.vector_store %arg11[%c0_32, %c0_33], %61 {strides = array<i32>} : memref<16x1xf32, #tpu.memory_space<vmem>>, vector<16x1xf32>,
    } else {
    }
    %c1_i32 = arith.constant 1 : i32
    %5 = arith.cmpi sge, %1, %c1_i32 : i32
    %c0 = arith.constant 0 : index
    %c0_1 = arith.constant 0 : index
    %6 = vector.load %arg3[%c0, %c0_1] : memref<16x16xbf16, #tpu.memory_space<vmem>>, vector<16x16xbf16>
    %c0_2 = arith.constant 0 : index
    %c0_3 = arith.constant 0 : index
    %7 = vector.load %arg2[%c0_2, %c0_3] : memref<16x16xbf16, #tpu.memory_space<vmem>>, vector<16x16xbf16>
    %8 = arith.select %5, %6, %7 : vector<16x16xbf16>
    %c0_4 = arith.constant 0 : index
    %c0_5 = arith.constant 0 : index
    %9 = vector.load %arg4[%c0_4, %c0_5] : memref<16x128xbf16, #tpu.memory_space<vmem>>, vector<16x128xbf16>
    %cst = arith.constant dense<0.000000e+00> : vector<16x128xf32>
    %10 = tpu.matmul %8, %9, %cst {dimension_numbers = #tpu.dot_dimension_numbers<[1], [0], [0], [1], [0, 0, 1, 1], [], []>} : vector<16x16xbf16>, vector<16x128xbf16>, vector<16x128xf32> -> vector<16x128xf32>
    %c0_6 = arith.constant 0 : index
    %c0_7 = arith.constant 0 : index
    %11 = vector.load %arg5[%c0_6, %c0_7] : memref<1x128xf32, #tpu.memory_space<vmem>>, vector<1x128xf32>
    %12 = vector.broadcast %11 : vector<1x128xf32> to vector<16x128xf32>
    %13 = arith.addf %10, %12 : vector<16x128xf32>
    %cst_8 = arith.constant 0.000000e+00 : f32
    %14 = vector.broadcast %cst_8 : f32 to vector<16x128xf32>
    %15 = arith.maximumf %13, %14 : vector<16x128xf32>
    %16 = arith.truncf %15 : vector<16x128xf32> to vector<16x128xbf16>
    %c0_9 = arith.constant 0 : index
    %c0_10 = arith.constant 0 : index
    %17 = vector.load %arg6[%c0_9, %c0_10] : memref<128x128xbf16, #tpu.memory_space<vmem>>, vector<128x128xbf16>
    %cst_11 = arith.constant dense<0.000000e+00> : vector<16x128xf32>
    %18 = tpu.matmul %16, %17, %cst_11 {dimension_numbers = #tpu.dot_dimension_numbers<[1], [0], [0], [1], [0, 0, 1, 1], [], []>} : vector<16x128xbf16>, vector<128x128xbf16>, vector<16x128xf32> -> vector<16x128xf32>
    %c0_12 = arith.constant 0 : index
    %c0_13 = arith.constant 0 : index
    %19 = vector.load %arg7[%c0_12, %c0_13] : memref<1x128xf32, #tpu.memory_space<vmem>>, vector<1x128xf32>
    %20 = vector.broadcast %19 : vector<1x128xf32> to vector<16x128xf32>
    %21 = arith.addf %18, %20 : vector<16x128xf32>
    %cst_14 = arith.constant 0.000000e+00 : f32
    %22 = vector.broadcast %cst_14 : f32 to vector<16x128xf32>
    %23 = arith.maximumf %21, %22 : vector<16x128xf32>
    %c0_15 = arith.constant 0 : index
    %c0_16 = arith.constant 0 : index
    %24 = vector.load %arg8[%c0_15, %c0_16] : memref<1x128xf32, #tpu.memory_space<vmem>>, vector<1x128xf32>
    %25 = vector.broadcast %24 : vector<1x128xf32> to vector<16x128xf32>
    %26 = arith.mulf %23, %25 : vector<16x128xf32>
    %cst_17 = arith.constant dense<0.000000e+00> : vector<16xf32>
    %27 = vector.multi_reduction <add>, %26, %cst_17 [1] : vector<16x128xf32> to vector<16xf32>
    %28 = vector.shape_cast %27 : vector<16xf32> to vector<16x1xf32>
    %c0_18 = arith.constant 0 : index
    %29 = memref.load %arg9[%c0_18] : memref<1xf32, #tpu.memory_space<smem>>
    %30 = vector.broadcast %29 : f32 to vector<16x1xf32>
    %31 = arith.addf %28, %30 : vector<16x1xf32>
    %c1_i32_19 = arith.constant 1 : i32
    %32 = arith.subi %1, %c1_i32_19 : i32
    %33 = arith.select %5, %32, %1 : i32
    %c16_i32 = arith.constant 16 : i32
    %c16_i32_20 = arith.constant 16 : i32
    %34 = arith.select %5, %c16_i32, %c16_i32_20 : i32
    %35 = tpu.iota {dimensions = array<i32: 0>} : vector<16x1xi32>
    %c16_i32_21 = arith.constant 16 : i32
    %36 = arith.muli %33, %c16_i32_21 : i32
    %37 = vector.broadcast %36 : i32 to vector<16x1xi32>
    %38 = arith.addi %35, %37 : vector<16x1xi32>
    %39 = vector.broadcast %34 : i32 to vector<16x1xi32>
    %40 = arith.cmpi slt, %38, %39 : vector<16x1xi32>
    %41 = arith.extui %40 : vector<16x1xi1> to vector<16x1xi32>
    %42 = arith.sitofp %41 : vector<16x1xi32> to vector<16x1xf32>
    %cst_22 = arith.constant 0.000000e+00 : f32
    %43 = vector.broadcast %cst_22 : f32 to vector<16x1xf32>
    %44 = arith.maximumf %31, %43 : vector<16x1xf32>
    %cst_23 = arith.constant 0.000000e+00 : f32
    %45 = vector.broadcast %cst_23 : f32 to vector<16x1xf32>
    %46 = arith.select %5, %31, %45 : vector<16x1xf32>
    %47 = arith.subf %44, %46 : vector<16x1xf32>
    %48 = math.absf %31 : vector<16x1xf32>
    %cst_24 = arith.constant 0.000000e+00 : f32
    %49 = vector.broadcast %cst_24 : f32 to vector<16x1xf32>
    %50 = arith.subf %49, %48 : vector<16x1xf32>
    %51 = math.exp %50 : vector<16x1xf32>
    %52 = math.log1p %51 : vector<16x1xf32>
    %53 = arith.addf %47, %52 : vector<16x1xf32>
    %c0_25 = arith.constant 0 : index
    %c0_26 = arith.constant 0 : index
    %54 = vector.load %arg11[%c0_25, %c0_26] : memref<16x1xf32, #tpu.memory_space<vmem>>, vector<16x1xf32>
    %55 = arith.mulf %53, %42 : vector<16x1xf32>
    %56 = arith.addf %54, %55 : vector<16x1xf32>
    %c0_27 = arith.constant 0 : index
    %c0_28 = arith.constant 0 : index
    %57 = vector.load %arg11[%c0_27, %c0_28] : memref<16x1xf32, #tpu.memory_space<vmem>>, vector<16x1xf32>
    tpu.vector_store %arg11[%c0_27, %c0_28], %56 {strides = array<i32>} : memref<16x1xf32, #tpu.memory_space<vmem>>, vector<16x1xf32>,
    %c1_i32_29 = arith.constant 1 : i32
    %58 = arith.cmpi eq, %arg1, %c1_i32_29 : i32
    %59 = arith.extui %58 : i1 to i32
    %c0_i32_30 = arith.constant 0 : i32
    %60 = arith.cmpi ne, %59, %c0_i32_30 : i32
    scf.if %60 {
      %c0_31 = arith.constant 0 : index
      %c0_32 = arith.constant 0 : index
      %61 = vector.load %arg11[%c0_31, %c0_32] : memref<16x1xf32, #tpu.memory_space<vmem>>, vector<16x1xf32>
      %62 = vector.shape_cast %61 : vector<16x1xf32> to vector<1x16x1xf32>
      %cst_33 = arith.constant dense<0.000000e+00> : vector<1xf32>
      %63 = vector.multi_reduction <add>, %62, %cst_33 [1, 2] : vector<1x16x1xf32> to vector<1xf32>
      %64 = vector.shape_cast %63 : vector<1xf32> to vector<1x1x1xf32>
      %65 = vector.extract %64[0, 0, 0] : f32 from vector<1x1x1xf32>
      %66 = vector.broadcast %65 : f32 to vector<1x8x128xf32>
      %c0_34 = arith.constant 0 : index
      %c0_35 = arith.constant 0 : index
      %c0_36 = arith.constant 0 : index
      %67 = vector.load %arg10[%c0_34, %c0_35, %c0_36] : memref<1x8x128xf32, #tpu.memory_space<vmem>>, vector<1x8x128xf32>
      tpu.vector_store %arg10[%c0_34, %c0_35, %c0_36], %66 {strides = array<i32>} : memref<1x8x128xf32, #tpu.memory_space<vmem>>, vector<1x8x128xf32>,
    } else {
    }
    return
  }
  func.func @transform_0(%arg0: i32, %arg1: i32) -> (i32, i32) {
    %c2_i32 = arith.constant 2 : i32
    %0 = arith.muli %arg0, %c2_i32 : i32
    %1 = arith.addi %0, %arg1 : i32
    %c0_i32 = arith.constant 0 : i32
    %c0_i32_0 = arith.constant 0 : i32
    %2 = arith.maxsi %c0_i32, %1 : i32
    %3 = arith.minsi %c0_i32_0, %2 : i32
    %c0_i32_1 = arith.constant 0 : i32
    %c0_i32_2 = arith.constant 0 : i32
    return %3, %c0_i32_1 : i32, i32
  }
  func.func @transform_1(%arg0: i32, %arg1: i32) -> (i32, i32) {
    %c2_i32 = arith.constant 2 : i32
    %0 = arith.muli %arg0, %c2_i32 : i32
    %1 = arith.addi %0, %arg1 : i32
    %c1_i32 = arith.constant 1 : i32
    %2 = arith.subi %1, %c1_i32 : i32
    %c0_i32 = arith.constant 0 : i32
    %c0_i32_0 = arith.constant 0 : i32
    %3 = arith.maxsi %c0_i32, %2 : i32
    %4 = arith.minsi %c0_i32_0, %3 : i32
    %c0_i32_1 = arith.constant 0 : i32
    %c0_i32_2 = arith.constant 0 : i32
    return %4, %c0_i32_1 : i32, i32
  }
  func.func @transform_2(%arg0: i32, %arg1: i32) -> (i32, i32) {
    %c0_i32 = arith.constant 0 : i32
    %c0_i32_0 = arith.constant 0 : i32
    %c0_i32_1 = arith.constant 0 : i32
    return %c0_i32, %c0_i32_0 : i32, i32
  }
  func.func @transform_3(%arg0: i32, %arg1: i32) -> (i32, i32) {
    %c0_i32 = arith.constant 0 : i32
    %c0_i32_0 = arith.constant 0 : i32
    %c0_i32_1 = arith.constant 0 : i32
    return %c0_i32, %c0_i32_0 : i32, i32
  }
  func.func @transform_4(%arg0: i32, %arg1: i32) -> (i32, i32) {
    %c0_i32 = arith.constant 0 : i32
    %c0_i32_0 = arith.constant 0 : i32
    %c0_i32_1 = arith.constant 0 : i32
    return %c0_i32, %c0_i32_0 : i32, i32
  }
  func.func @transform_5(%arg0: i32, %arg1: i32) -> (i32, i32) {
    %c0_i32 = arith.constant 0 : i32
    %c0_i32_0 = arith.constant 0 : i32
    %c0_i32_1 = arith.constant 0 : i32
    return %c0_i32, %c0_i32_0 : i32, i32
  }
  func.func @transform_6(%arg0: i32, %arg1: i32) -> (i32, i32) {
    %c0_i32 = arith.constant 0 : i32
    %c0_i32_0 = arith.constant 0 : i32
    %c0_i32_1 = arith.constant 0 : i32
    return %c0_i32, %c0_i32_0 : i32, i32
  }
  func.func @transform_7(%arg0: i32, %arg1: i32) -> i32 {
    %c0_i32 = arith.constant 0 : i32
    %c0_i32_0 = arith.constant 0 : i32
    return %c0_i32 : i32
  }
  func.func @transform_8(%arg0: i32, %arg1: i32) -> (i32, i32, i32) {
    %c0_i32 = arith.constant 0 : i32
    %c0_i32_0 = arith.constant 0 : i32
    %c0_i32_1 = arith.constant 0 : i32
    return %arg0, %c0_i32, %c0_i32_0 : i32, i32, i32
  }
}

</mosaic_0001>

<llo_original>
// kernel: tpu_custom_call.1
$region0: #{tpu_custom_call.1}
  #allocation0 [shape = 'u32[]', space=smem, size = 0x4, offset = 0x4, fixed_abs, tag = 'smem constant byte address 0x4 - core index']
  #allocation1 [shape = 'u32[144,128]{1,0:T(1,128)}', space=vmem, size = 0x12000, scoped, tag = 'internal scratch']
  #allocation2 [shape = 'f32[16,1]{1,0:T(8,128)}', space=vmem, size = 0x2000, scoped, tag = 'scratch operand']
  #allocation3 [shape = 'f32[1]{0:T(128)S(6)}', space=smem, size = 0x200, scoped, tag = 'scoped memory for tpu_custom_call.1']
  %s0 = inlined_call_operand.hbm [shape: bf16[16,16], index: 0, kind: input, shape index: {}]
  %s1 = inlined_call_operand.hbm [shape: bf16[16,16], index: 1, kind: input, shape index: {}]
  %s2 = inlined_call_operand.hbm [shape: bf16[16,128], index: 2, kind: input, shape index: {}]
  %s3 = inlined_call_operand.vmem [shape: f32[1,128], index: 3, kind: input, shape index: {}]
  %s4 = inlined_call_operand.hbm [shape: bf16[128,128], index: 4, kind: input, shape index: {}]
  %s5 = inlined_call_operand.vmem [shape: f32[1,128], index: 5, kind: input, shape index: {}]
  %s6 = inlined_call_operand.vmem [shape: f32[1,128], index: 6, kind: input, shape index: {}]
  %s7 = inlined_call_operand.<no memory space> [shape: f32[1], index: 7, kind: input, shape index: {}]
  %s8 = inlined_call_operand.hbm [shape: f32[1,8,128], index: 8, kind: output, shape index: {}]
  %s9 = sld [smem:[#allocation0]]
  $region89: #{tpu_custom_call.1} parent=0
    _
  %s11 = ssub.s32 1, %s9
  %s12 = scalar_select 0, %s11, %s9
  %13 = sst [smem:[#allocation3]] %s7
  $region1: #{tpu_custom_call.1} parent=0
    #allocation4 [shape = 'u8[8192]{0}', space=vmem, size = 0x2000, scoped, tag = 'input window, operand 0']
    #allocation5 [shape = 's32[2]{0}', space=sflag, size = 0x8, scoped, tag = 'scoped memory for tpu_custom_call.1']
    #allocation6 [shape = 's32[2]{0}', space=sflag, size = 0x8, scoped, tag = 'scoped memory for tpu_custom_call.1']
    #allocation7 [shape = 'u8[8192]{0}', space=vmem, size = 0x2000, scoped, tag = 'input window, operand 1']
    #allocation8 [shape = 's32[2]{0}', space=sflag, size = 0x8, scoped, tag = 'scoped memory for tpu_custom_call.1']
    #allocation9 [shape = 'u8[4096]{0}', space=vmem, size = 0x1000, scoped, tag = 'input window, operand 2, single buffered']
    #allocation10 [shape = 'u8[32768]{0}', space=vmem, size = 0x8000, scoped, tag = 'input window, operand 4, single buffered']
    #allocation11 [shape = 's32[1]{0}', space=sflag, size = 0x4, scoped, tag = 'scoped memory for tpu_custom_call.1']
    #allocation12 [shape = 'u8[4096]{0}', space=vmem, size = 0x1000, scoped, tag = 'output window, operand 0, single buffered']
    %14 = vsyncpa [#allocation5], 0
    %s15 = scalar_lea.sflag [#allocation5], 1
    %16 = vsyncpa %s15, 0
    %17 = vsyncpa [#allocation8], 0
    %s18 = scalar_lea.sflag [#allocation8], 1
    %19 = vsyncpa %s18, 0
    %20 = vsyncpa [#allocation11], 0
    %21 = vsyncpa [#allocation6], 0
    loop: start=0, step=1, limit=4
    $region2: #{tpu_custom_call.1} parent=1 // loop_pre_header
      _
    $region3: #{tpu_custom_call.1} parent=1 // loop_header
      %s23 = sphi 0, %s27
      %p24 = scmp.ge.s32.totalorder %s23, 4
      %s30 = sphi 0, %s42
      %s31 = sphi 0, %s38
      %s32 = sphi 0, %s30
      %s33 = sphi 0, %s31
      %s34 = sphi 0, %s32
      %s35 = sphi 0, %s33
      %s57 = sphi 0, %s59
      %s60 = sphi 0, %s57
      %s61 = sphi 0, %s60
      %s77 = sphi 0, %s61
      %s97 = sphi 0, %s99
      %s100 = sphi 0, %s97
      %s101 = sphi 0, %s100
      %s117 = sphi 0, %s101
      %s121 = sphi 0, %s121
      %s123 = sphi 0, %s121
      %s124 = sphi 0, %s123
      %s138 = sphi 0, %s124
      %s142 = sphi 0, %s142
      %s144 = sphi 0, %s142
      %s145 = sphi 0, %s144
      %s159 = sphi 0, %s145
      %s163 = sphi 0, %s163
      %s165 = sphi 0, %s163
      %s166 = sphi 0, %s165
      %s180 = sphi 0, %s166
      %s184 = sphi 0, %s184
      %s186 = sphi 0, %s184
      %s187 = sphi 0, %s186
      %s201 = sphi 0, %s187
      %s205 = sphi 0, %s205
      %s207 = sphi 0, %s205
      %s208 = sphi 0, %s207
      %s222 = sphi 0, %s208
      %s226 = sphi 0, %s226
      %s228 = sphi 0, %s226
      %s229 = sphi 0, %s228
      %s243 = sphi 0, %s229
      %s249 = sphi 0, %s251
      %s252 = sphi 0, %s249
      %s253 = sphi 0, %s252
      %s269 = sphi 0, %s253
    $region4: #{tpu_custom_call.1} parent=1 // loop_header_branch
      %26 = sbr.rel (%p24) target = $region8
    $region5: #{tpu_custom_call.1} parent=1 // loop_body
      %s28 = ssub.s32 %s23, 1
      %s29 = ssub.s32 %s23, 2
      %s36 = sadd.s32 1, %s31
      %p37 = scmp.ge.s32.totalorder %s36, 2
      %s38 = scalar_select %p37, 0, %s36
      %s39 = sadd.s32 1, %s30
      %s40 = scalar_select %p37, %s39, %s30
      %p41 = scmp.ge.s32.totalorder %s40, 1
      %s42 = scalar_select %p41, 0, %s40
      %s43 = smul.u32 %s30, 2
      %s44 = sadd.s32 %s43, %s31
      %p45 = scmp.gt.s32.totalorder %s44, 0
      %s46 = scalar_select %p45, %s44, 0
      %p47 = scmp.lt.s32.totalorder %s46, 0
      %s48 = scalar_select %p47, %s46, 0
      %s49 = smul.u32 %s42, 2
      %s50 = sadd.s32 %s49, %s38
      %p51 = scmp.gt.s32.totalorder %s50, 0
      %s52 = scalar_select %p51, %s50, 0
      %p53 = scmp.lt.s32.totalorder %s52, 0
      %s54 = scalar_select %p53, %s52, 0
      %s55 = ssub.s32 %s48, %s54
      %p56 = scmp.eq.s32.totalorder %s55, 0
      %s58 = sadd.s32 %s57, 1
      %s59 = scalar_select %p56, %s57, %s58
      %p62 = pneg %p56
      %p63 = scmp.eq.s32.totalorder %s23, 1
      %p64 = por %p62, %p63
      %p65 = scmp.ne.s32.totalorder %s57, %s60
      %p66 = scmp.eq.s32.totalorder %s23, 0
      %p67 = por %p65, %p66
      %p68 = scmp.ne.s32.totalorder %s57, %s60
      %p69 = scmp.eq.s32.totalorder %s28, 1
      %p70 = por %p68, %p69
      %p71 = scmp.ne.s32.totalorder %s60, %s61
      %p72 = scmp.eq.s32.totalorder %s28, 0
      %p73 = por %p71, %p72
      %p74 = scmp.ne.s32.totalorder %s60, %s61
      %p75 = scmp.eq.s32.totalorder %s29, 1
      %p76 = por %p74, %p75
      %p78 = scmp.ne.s32.totalorder %s61, %s77
      %p79 = scmp.eq.s32.totalorder %s29, 0
      %p80 = por %p78, %p79
      %s81 = smul.u32 %s30, 2
      %s82 = sadd.s32 %s81, %s31
      %s83 = ssub.s32 %s82, 1
      %p84 = scmp.gt.s32.totalorder %s83, 0
      %s85 = scalar_select %p84, %s83, 0
      %p86 = scmp.lt.s32.totalorder %s85, 0
      %s87 = scalar_select %p86, %s85, 0
      %s88 = smul.u32 %s42, 2
      %s89 = sadd.s32 %s88, %s38
      %s90 = ssub.s32 %s89, 1
      %p91 = scmp.gt.s32.totalorder %s90, 0
      %s92 = scalar_select %p91, %s90, 0
      %p93 = scmp.lt.s32.totalorder %s92, 0
      %s94 = scalar_select %p93, %s92, 0
      %s95 = ssub.s32 %s87, %s94
      %p96 = scmp.eq.s32.totalorder %s95, 0
      %s98 = sadd.s32 %s97, 1
      %s99 = scalar_select %p96, %s97, %s98
      %p102 = pneg %p96
      %p103 = scmp.eq.s32.totalorder %s23, 1
      %p104 = por %p102, %p103
      %p105 = scmp.ne.s32.totalorder %s97, %s100
      %p106 = scmp.eq.s32.totalorder %s23, 0
      %p107 = por %p105, %p106
      %p108 = scmp.ne.s32.totalorder %s97, %s100
      %p109 = scmp.eq.s32.totalorder %s28, 1
      %p110 = por %p108, %p109
      %p111 = scmp.ne.s32.totalorder %s100, %s101
      %p112 = scmp.eq.s32.totalorder %s28, 0
      %p113 = por %p111, %p112
      %p114 = scmp.ne.s32.totalorder %s100, %s101
      %p115 = scmp.eq.s32.totalorder %s29, 1
      %p116 = por %p114, %p115
      %p118 = scmp.ne.s32.totalorder %s101, %s117
      %p119 = scmp.eq.s32.totalorder %s29, 0
      %p120 = por %p118, %p119
      %s122 = sadd.s32 %s121, 1
      %p125 = scmp.eq.s32.totalorder %s23, 1
      %p126 = scmp.ne.s32.totalorder %s121, %s123
      %p127 = scmp.eq.s32.totalorder %s23, 0
      %p128 = por %p126, %p127
      %p129 = scmp.ne.s32.totalorder %s121, %s123
      %p130 = scmp.eq.s32.totalorder %s28, 1
      %p131 = por %p129, %p130
      %p132 = scmp.ne.s32.totalorder %s123, %s124
      %p133 = scmp.eq.s32.totalorder %s28, 0
      %p134 = por %p132, %p133
      %p135 = scmp.ne.s32.totalorder %s123, %s124
      %p136 = scmp.eq.s32.totalorder %s29, 1
      %p137 = por %p135, %p136
      %p139 = scmp.ne.s32.totalorder %s124, %s138
      %p140 = scmp.eq.s32.totalorder %s29, 0
      %p141 = por %p139, %p140
      %s143 = sadd.s32 %s142, 1
      %p146 = scmp.eq.s32.totalorder %s23, 1
      %p147 = scmp.ne.s32.totalorder %s142, %s144
      %p148 = scmp.eq.s32.totalorder %s23, 0
      %p149 = por %p147, %p148
      %p150 = scmp.ne.s32.totalorder %s142, %s144
      %p151 = scmp.eq.s32.totalorder %s28, 1
      %p152 = por %p150, %p151
      %p153 = scmp.ne.s32.totalorder %s144, %s145
      %p154 = scmp.eq.s32.totalorder %s28, 0
      %p155 = por %p153, %p154
      %p156 = scmp.ne.s32.totalorder %s144, %s145
      %p157 = scmp.eq.s32.totalorder %s29, 1
      %p158 = por %p156, %p157
      %p160 = scmp.ne.s32.totalorder %s145, %s159
      %p161 = scmp.eq.s32.totalorder %s29, 0
      %p162 = por %p160, %p161
      %s164 = sadd.s32 %s163, 1
      %p167 = scmp.eq.s32.totalorder %s23, 1
      %p168 = scmp.ne.s32.totalorder %s163, %s165
      %p169 = scmp.eq.s32.totalorder %s23, 0
      %p170 = por %p168, %p169
      %p171 = scmp.ne.s32.totalorder %s163, %s165
      %p172 = scmp.eq.s32.totalorder %s28, 1
      %p173 = por %p171, %p172
      %p174 = scmp.ne.s32.totalorder %s165, %s166
      %p175 = scmp.eq.s32.totalorder %s28, 0
      %p176 = por %p174, %p175
      %p177 = scmp.ne.s32.totalorder %s165, %s166
      %p178 = scmp.eq.s32.totalorder %s29, 1
      %p179 = por %p177, %p178
      %p181 = scmp.ne.s32.totalorder %s166, %s180
      %p182 = scmp.eq.s32.totalorder %s29, 0
      %p183 = por %p181, %p182
      %s185 = sadd.s32 %s184, 1
      %p188 = scmp.eq.s32.totalorder %s23, 1
      %p189 = scmp.ne.s32.totalorder %s184, %s186
      %p190 = scmp.eq.s32.totalorder %s23, 0
      %p191 = por %p189, %p190
      %p192 = scmp.ne.s32.totalorder %s184, %s186
      %p193 = scmp.eq.s32.totalorder %s28, 1
      %p194 = por %p192, %p193
      %p195 = scmp.ne.s32.totalorder %s186, %s187
      %p196 = scmp.eq.s32.totalorder %s28, 0
      %p197 = por %p195, %p196
      %p198 = scmp.ne.s32.totalorder %s186, %s187
      %p199 = scmp.eq.s32.totalorder %s29, 1
      %p200 = por %p198, %p199
      %p202 = scmp.ne.s32.totalorder %s187, %s201
      %p203 = scmp.eq.s32.totalorder %s29, 0
      %p204 = por %p202, %p203
      %s206 = sadd.s32 %s205, 1
      %p209 = scmp.eq.s32.totalorder %s23, 1
      %p210 = scmp.ne.s32.totalorder %s205, %s207
      %p211 = scmp.eq.s32.totalorder %s23, 0
      %p212 = por %p210, %p211
      %p213 = scmp.ne.s32.totalorder %s205, %s207
      %p214 = scmp.eq.s32.totalorder %s28, 1
      %p215 = por %p213, %p214
      %p216 = scmp.ne.s32.totalorder %s207, %s208
      %p217 = scmp.eq.s32.totalorder %s28, 0
      %p218 = por %p216, %p217
      %p219 = scmp.ne.s32.totalorder %s207, %s208
      %p220 = scmp.eq.s32.totalorder %s29, 1
      %p221 = por %p219, %p220
      %p223 = scmp.ne.s32.totalorder %s208, %s222
      %p224 = scmp.eq.s32.totalorder %s29, 0
      %p225 = por %p223, %p224
      %s227 = sadd.s32 %s226, 1
      %p230 = scmp.eq.s32.totalorder %s23, 1
      %p231 = scmp.ne.s32.totalorder %s226, %s228
      %p232 = scmp.eq.s32.totalorder %s23, 0
      %p233 = por %p231, %p232
      %p234 = scmp.ne.s32.totalorder %s226, %s228
      %p235 = scmp.eq.s32.totalorder %s28, 1
      %p236 = por %p234, %p235
      %p237 = scmp.ne.s32.totalorder %s228, %s229
      %p238 = scmp.eq.s32.totalorder %s28, 0
      %p239 = por %p237, %p238
      %p240 = scmp.ne.s32.totalorder %s228, %s229
      %p241 = scmp.eq.s32.totalorder %s29, 1
      %p242 = por %p240, %p241
      %p244 = scmp.ne.s32.totalorder %s229, %s243
      %p245 = scmp.eq.s32.totalorder %s29, 0
      %p246 = por %p244, %p245
      %s247 = ssub.s32 %s30, %s42
      %p248 = scmp.eq.s32.totalorder %s247, 0
      %s250 = sadd.s32 %s249, 1
      %s251 = scalar_select %p248, %s249, %s250
      %p254 = pneg %p248
      %p255 = scmp.eq.s32.totalorder %s23, 1
      %p256 = por %p254, %p255
      %p257 = scmp.ne.s32.totalorder %s249, %s252
      %p258 = scmp.eq.s32.totalorder %s23, 0
      %p259 = por %p257, %p258
      %p260 = scmp.ne.s32.totalorder %s249, %s252
      %p261 = scmp.eq.s32.totalorder %s28, 1
      %p262 = por %p260, %p261
      %p263 = scmp.ne.s32.totalorder %s252, %s253
      %p264 = scmp.eq.s32.totalorder %s28, 0
      %p265 = por %p263, %p264
      %p266 = scmp.ne.s32.totalorder %s252, %s253
      %p267 = scmp.eq.s32.totalorder %s29, 1
      %p268 = por %p266, %p267
      %p270 = scmp.ne.s32.totalorder %s253, %s269
      %p271 = scmp.eq.s32.totalorder %s29, 0
      %p272 = por %p270, %p271
      %p273 = scmp.le.s32.totalorder 1, %s23
      %p274 = scmp.lt.s32.totalorder %s23, 3
      %p275 = pnand %p273, %p274
      %p276 = pneg %p275
      // Predicated region
      $region9: #{tpu_custom_call.1} parent=5 // pred_check
        _
      $region10: #{tpu_custom_call.1} parent=5 // pred_check_branch
        %278 = sbr.rel (%p275) target = $region12
      $region11: #{tpu_custom_call.1} parent=5 // pred_region
        %s279 = ssub.s32 %s23, 1
        // Predicated region
        $region13: #{tpu_custom_call.1} parent=11 // pred_check
          %p280 = pneg %p134
        $region14: #{tpu_custom_call.1} parent=11 // pred_check_branch
          %282 = sbr.rel (%p280) target = $region16
        $region15: #{tpu_custom_call.1} parent=11 // pred_region
          %s284 = ssub.s32 128, 128
          %285 = vsyncadd [#allocation8], %s284
          %s286 = sshll.u32 [#allocation9], 4
          %s287 = int_to_ptr.vmem [resolvable:$true] %s286
          %292 = dma.hbm_to_vmem [thread:$0]  %s2, 128, %s287, [#allocation8], 64, 64, 4
        $region16: #{tpu_custom_call.1} parent=11 // pred_fallthru
          _
        // Predicated region
        $region17: #{tpu_custom_call.1} parent=11 // pred_check
          %p293 = pneg %p155
        $region18: #{tpu_custom_call.1} parent=11 // pred_check_branch
          %295 = sbr.rel (%p293) target = $region20
        $region19: #{tpu_custom_call.1} parent=11 // pred_region
          _
        $region20: #{tpu_custom_call.1} parent=11 // pred_fallthru
          _
        // Predicated region
        $region21: #{tpu_custom_call.1} parent=11 // pred_check
          %p296 = pneg %p176
        $region22: #{tpu_custom_call.1} parent=11 // pred_check_branch
          %298 = sbr.rel (%p296) target = $region24
        $region23: #{tpu_custom_call.1} parent=11 // pred_region
          %s300 = ssub.s32 1024, 1024
          %301 = vsyncadd [#allocation11], %s300
          %s302 = sshll.u32 [#allocation10], 4
          %s303 = int_to_ptr.vmem [resolvable:$true] %s302
          %308 = dma.hbm_to_vmem [thread:$0]  %s4, 1024, %s303, [#allocation11], 64, 64, 4
        $region24: #{tpu_custom_call.1} parent=11 // pred_fallthru
          _
        // Predicated region
        $region25: #{tpu_custom_call.1} parent=11 // pred_check
          %p309 = pneg %p197
        $region26: #{tpu_custom_call.1} parent=11 // pred_check_branch
          %311 = sbr.rel (%p309) target = $region28
        $region27: #{tpu_custom_call.1} parent=11 // pred_region
          _
        $region28: #{tpu_custom_call.1} parent=11 // pred_fallthru
          _
        // Predicated region
        $region29: #{tpu_custom_call.1} parent=11 // pred_check
          %p312 = pneg %p218
        $region30: #{tpu_custom_call.1} parent=11 // pred_check_branch
          %314 = sbr.rel (%p312) target = $region32
        $region31: #{tpu_custom_call.1} parent=11 // pred_region
          _
        $region32: #{tpu_custom_call.1} parent=11 // pred_fallthru
          _
        // Predicated region
        $region33: #{tpu_custom_call.1} parent=11 // pred_check
          %p315 = pneg %p239
        $region34: #{tpu_custom_call.1} parent=11 // pred_check_branch
          %317 = sbr.rel (%p315) target = $region36
        $region35: #{tpu_custom_call.1} parent=11 // pred_region
          _
        $region36: #{tpu_custom_call.1} parent=11 // pred_fallthru
          _
      $region12: #{tpu_custom_call.1} parent=5 // pred_fallthru
        _
      %p318 = scmp.lt.s32.totalorder %s23, 2
      // Predicated region
      $region37: #{tpu_custom_call.1} parent=5 // pred_check
        %p319 = pneg %p318
      $region38: #{tpu_custom_call.1} parent=5 // pred_check_branch
        %321 = sbr.rel (%p319) target = $region40
      $region39: #{tpu_custom_call.1} parent=5 // pred_region
        // Predicated region
        $region41: #{tpu_custom_call.1} parent=39 // pred_check
          %p322 = pneg %p67
        $region42: #{tpu_custom_call.1} parent=39 // pred_check_branch
          %324 = sbr.rel (%p322) target = $region44
        $region43: #{tpu_custom_call.1} parent=39 // pred_region
          %s325 = sand.u32 %s57, 1
          %s326 = scalar_lea.sflag [#allocation5], %s325
          %s327 = sand.u32 %s57, 1
          %s328 = smul.addr %s327, 8
          %s329 = scalar_lea.vmem [#allocation4], %s328
          %s330 = smul.u32 %s30, 2
          %s331 = sadd.s32 %s330, %s31
          %p332 = scmp.gt.s32.totalorder %s331, 0
          %s333 = scalar_select %p332, %s331, 0
          %p334 = scmp.lt.s32.totalorder %s333, 0
          %s335 = scalar_select %p334, %s333, 0
          %s336 = smul.u32 2, %s335
          %s338 = ssub.s32 128, 128
          %339 = vsyncadd %s326, %s338
          %s340 = smul.addr %s336, 64
          %s341 = scalar_lea.hbm %s0, %s340
          %s342 = sshll.u32 %s329, 4
          %s343 = int_to_ptr.vmem [resolvable:$true] %s342
          %348 = dma.hbm_to_vmem [thread:$0]  %s341, 128, %s343, %s326, 64, 64, 4
        $region44: #{tpu_custom_call.1} parent=39 // pred_fallthru
          _
        // Predicated region
        $region45: #{tpu_custom_call.1} parent=39 // pred_check
          %p349 = pneg %p107
        $region46: #{tpu_custom_call.1} parent=39 // pred_check_branch
          %351 = sbr.rel (%p349) target = $region48
        $region47: #{tpu_custom_call.1} parent=39 // pred_region
          %s352 = sand.u32 %s23, 1
          %s353 = scalar_lea.sflag [#allocation8], %s352
          %s354 = sand.u32 %s97, 1
          %s355 = smul.addr %s354, 8
          %s356 = scalar_lea.vmem [#allocation7], %s355
          %s357 = smul.u32 %s30, 2
          %s358 = sadd.s32 %s357, %s31
          %s359 = ssub.s32 %s358, 1
          %p360 = scmp.gt.s32.totalorder %s359, 0
          %s361 = scalar_select %p360, %s359, 0
          %p362 = scmp.lt.s32.totalorder %s361, 0
          %s363 = scalar_select %p362, %s361, 0
          %s364 = smul.u32 2, %s363
          %s366 = ssub.s32 128, 128
          %367 = vsyncadd %s353, %s366
          %s368 = smul.addr %s364, 64
          %s369 = scalar_lea.hbm %s1, %s368
          %s370 = sshll.u32 %s356, 4
          %s371 = int_to_ptr.vmem [resolvable:$true] %s370
          %376 = dma.hbm_to_vmem [thread:$0]  %s369, 128, %s371, %s353, 64, 64, 4
        $region48: #{tpu_custom_call.1} parent=39 // pred_fallthru
          _
      $region40: #{tpu_custom_call.1} parent=5 // pred_fallthru
        _
      %p377 = scmp.le.s32.totalorder 1, %s23
      %p378 = scmp.lt.s32.totalorder %s23, 3
      %p379 = pnand %p377, %p378
      %p380 = pneg %p379
      // Predicated region
      $region49: #{tpu_custom_call.1} parent=5 // pred_check
        _
      $region50: #{tpu_custom_call.1} parent=5 // pred_check_branch
        %382 = sbr.rel (%p379) target = $region52
      $region51: #{tpu_custom_call.1} parent=5 // pred_region
        %s383 = ssub.s32 %s23, 1
        %s384 = sand.u32 %s60, 1
        %s385 = scalar_lea.sflag [#allocation5], %s384
        %s386 = sand.u32 %s60, 1
        %s387 = smul.addr %s386, 8
        %s388 = scalar_lea.vmem [#allocation4], %s387
        // Predicated region
        $region53: #{tpu_custom_call.1} parent=51 // pred_check
          %p389 = pneg %p73
        $region54: #{tpu_custom_call.1} parent=51 // pred_check_branch
          %391 = sbr.rel (%p389) target = $region56
        $region55: #{tpu_custom_call.1} parent=51 // pred_region
          %392 = dma.done %s385, 128
        $region56: #{tpu_custom_call.1} parent=51 // pred_fallthru
          _
        %s393 = sand.u32 %s28, 1
        %s394 = scalar_lea.sflag [#allocation8], %s393
        %s395 = sand.u32 %s100, 1
        %s396 = smul.addr %s395, 8
        %s397 = scalar_lea.vmem [#allocation7], %s396
        // Predicated region
        $region57: #{tpu_custom_call.1} parent=51 // pred_check
          %p398 = pneg %p113
        $region58: #{tpu_custom_call.1} parent=51 // pred_check_branch
          %400 = sbr.rel (%p398) target = $region60
        $region59: #{tpu_custom_call.1} parent=51 // pred_region
          %401 = dma.done %s394, 128
        $region60: #{tpu_custom_call.1} parent=51 // pred_fallthru
          _
        // Predicated region
        $region61: #{tpu_custom_call.1} parent=51 // pred_check
          %p402 = pneg %p134
        $region62: #{tpu_custom_call.1} parent=51 // pred_check_branch
          %404 = sbr.rel (%p402) target = $region64
        $region63: #{tpu_custom_call.1} parent=51 // pred_region
          %405 = dma.done [#allocation8], 128
        $region64: #{tpu_custom_call.1} parent=51 // pred_fallthru
          _
        // Predicated region
        $region65: #{tpu_custom_call.1} parent=51 // pred_check
          %p406 = pneg %p176
        $region66: #{tpu_custom_call.1} parent=51 // pred_check_branch
          %408 = sbr.rel (%p406) target = $region68
        $region67: #{tpu_custom_call.1} parent=51 // pred_region
          %409 = dma.done [#allocation11], 1024
        $region68: #{tpu_custom_call.1} parent=51 // pred_fallthru
          _
        %s410 = sand.u32 %s60, 1
        %s411 = scalar_lea.sflag [#allocation5], %s410
        %s412 = sand.u32 %s60, 1
        %s413 = smul.addr %s412, 8
        %s414 = scalar_lea.vmem [#allocation4], %s413
        %p415 = pneg %p73
        %p416 = pneg %p70
        %s417 = sand.u32 %s28, 1
        %s418 = scalar_lea.sflag [#allocation8], %s417
        %s419 = sand.u32 %s100, 1
        %s420 = smul.addr %s419, 8
        %s421 = scalar_lea.vmem [#allocation7], %s420
        %p422 = pneg %p113
        %p423 = pneg %p110
        %p424 = pneg %p134
        %p425 = pneg %p131
        %p426 = pneg %p155
        %p427 = pneg %p152
        %p428 = pneg %p176
        %p429 = pneg %p173
        %p430 = pneg %p197
        %p431 = pneg %p194
        %p432 = pneg %p218
        %p433 = pneg %p215
        %p434 = pneg %p239
        %p435 = pneg %p236
        %p436 = pneg %p265
        %p437 = pneg %p262
        %s438 = smul.u32 %s32, 2
        %s439 = sadd.s32 %s438, %s33
        %p440 = scmp.gt.s32.totalorder %s439, 0
        %s441 = scalar_select %p440, %s439, 0
        %p442 = scmp.lt.s32.totalorder %s441, 0
        %s443 = scalar_select %p442, %s441, 0
        %s444 = smul.u32 2, %s443
        %s445 = smul.u32 %s32, 2
        %s446 = sadd.s32 %s445, %s33
        %s447 = ssub.s32 %s446, 1
        %p448 = scmp.gt.s32.totalorder %s447, 0
        %s449 = scalar_select %p448, %s447, 0
        %p450 = scmp.lt.s32.totalorder %s449, 0
        %s451 = scalar_select %p450, %s449, 0
        %s452 = smul.u32 2, %s451
        %s454 = smul.u32 %s32, 2
        %s455 = sadd.s32 %s454, %s33
        %p456 = scmp.eq.s32.totalorder %s33, 0
        // Predicated region
        $region69: #{tpu_custom_call.1} parent=51 // pred_check
          %p457 = pneg %p456
        $region70: #{tpu_custom_call.1} parent=51 // pred_check_branch
          %459 = sbr.rel (%p457) target = $region72
        $region71: #{tpu_custom_call.1} parent=51 // pred_region
          %vm460 = vcmask 7168
          %461 = vst.msk [vmem:[#allocation2] sm:$0xff] %vm460, 0.0
          %462 = vst.msk [vmem:[#allocation2 + $0x8] sm:$0xff] %vm460, 0.0
        $region72: #{tpu_custom_call.1} parent=51 // pred_fallthru
          _
        %p463 = scmp.ge.s32.totalorder %s455, 1
        %v464 = vld [vmem:[%s397] sm:$0xf]
        %v465 = vld [vmem:[%s397 + $0x4] sm:$0xf]
        %v466 = vld [vmem:[%s388] sm:$0xf]
        %v467 = vld [vmem:[%s388 + $0x4] sm:$0xf]
        %s468 = scalar_select %p463, 1, 0
        %v469 = vstv %s468
        %vm470 = vcmp.eq.s32.totalorder %v469, 1
        %v471 = vsel %vm470, %v464, %v466
        %v472 = vsel %vm470, %v465, %v467
        %v473 = vld [vmem:[#allocation9] sm:$0xf]
        %v474 = vld [vmem:[#allocation9 + $0x4] sm:$0xf]
        %v475 = vld [vmem:[%s3] sm:$0x1]
        %v477 = vlaneseq
        %v478 = vshrl.u32 %v477, 7
        %v479 = vsub.s32 0, %v478
        %v480 = vrot.slane %v475, %v479
        %v484 = vunpack.c.l.b16 %v471
        %v485 = vunpack.c.l.b16 %v472
        %v486 = vpack.c.b16 %v485, %v484
        %v489 = vunpack.c.l.b16 %v473
        %v490 = vunpack.c.l.b16 %v474
        %v491 = vpack.c.b16 %v490, %v489
        %vm493 = vcmask 130048
        %v495 = vsel %vm493, %v486, 0
        %497 = vmatprep.subr.bf16.mxu0 0
        %498 = vmatpush1.bf16.msra.mxu0 0
        %499 = vmatprep.subr.bf16.mxu0 0
        %500 = vmatpush1.bf16.msra.mxu0 0
        %501 = vmatprep.subr.bf16.mxu0 0
        %502 = vmatpush1.bf16.msra.mxu0 0
        %503 = vmatprep.subr.bf16.mxu0 0
        %504 = vmatpush1.bf16.msra.mxu0 0
        %505 = vmatprep.subr.bf16.mxu0 0
        %506 = vmatpush1.bf16.msra.mxu0 0
        %507 = vmatprep.subr.bf16.mxu0 0
        %508 = vmatpush1.bf16.msra.mxu0 0
        %509 = vmatprep.subr.bf16.mxu0 0
        %510 = vmatpush1.bf16.msra.mxu0 0
        %511 = vmatprep.subr.bf16.mxu0 0
        %512 = vmatpush1.bf16.msra.mxu0 %v491
        %513 = vmatprep.subr.bf16.mxu0 0
        %514 = vmatpush2.bf16.msra.mxu0 0
        %515 = vmatprep.subr.bf16.mxu0 0
        %516 = vmatpush2.bf16.msra.mxu0 0
        %517 = vmatprep.subr.bf16.mxu0 0
        %518 = vmatpush2.bf16.msra.mxu0 0
        %519 = vmatprep.subr.bf16.mxu0 0
        %520 = vmatpush2.bf16.msra.mxu0 0
        %521 = vmatprep.subr.bf16.mxu0 0
        %522 = vmatpush2.bf16.msra.mxu0 0
        %523 = vmatprep.subr.bf16.mxu0 0
        %524 = vmatpush2.bf16.msra.mxu0 0
        %525 = vmatprep.subr.bf16.mxu0 0
        %526 = vmatpush2.bf16.msra.mxu0 0
        %527 = vmatprep.subr.bf16.mxu0 0
        %528 = vmatpush2.bf16.msra.mxu0 0
        %529 = vmatprep.mubr.bf16.mxu0 0
        %530 = vmatmul.mubr.bf16.gmra.mxu0 %v495
        %v531 = vpop.f32.mrf.mxu0
        %v532 = vadd.f32 %v480, %v531
        %v533 = vpop.f32.mrf.mxu0
        %v534 = vpop.f32.mrf.mxu0
        %v535 = vadd.f32 %v480, %v534
        %v536 = vpop.f32.mrf.mxu0
        %537 = vdwg.mxu0
        %v538 = vmax.f32 %v532, 0.0
        %v539 = vmax.f32 %v535, 0.0
        %v540 = vpack.c.bf16 %v539, %v538
        %v541 = vld [vmem:[#allocation10] sm:$0xf]
        %v542 = vld [vmem:[#allocation10 + $0x4] sm:$0xf]
        %v543 = vld [vmem:[#allocation10 + $0x8] sm:$0xf]
        %v544 = vld [vmem:[#allocation10 + $0xc] sm:$0xf]
        %v545 = vld [vmem:[#allocation10 + $0x10] sm:$0xf]
        %v546 = vld [vmem:[#allocation10 + $0x14] sm:$0xf]
        %v547 = vld [vmem:[#allocation10 + $0x18] sm:$0xf]
        %v548 = vld [vmem:[#allocation10 + $0x1c] sm:$0xf]
        %v549 = vld [vmem:[#allocation10 + $0x20] sm:$0xf]
        %v550 = vld [vmem:[#allocation10 + $0x24] sm:$0xf]
        %v551 = vld [vmem:[#allocation10 + $0x28] sm:$0xf]
        %v552 = vld [vmem:[#allocation10 + $0x2c] sm:$0xf]
        %v553 = vld [vmem:[#allocation10 + $0x30] sm:$0xf]
        %v554 = vld [vmem:[#allocation10 + $0x34] sm:$0xf]
        %v555 = vld [vmem:[#allocation10 + $0x38] sm:$0xf]
        %v556 = vld [vmem:[#allocation10 + $0x3c] sm:$0xf]
        %v557 = vld [vmem:[%s5] sm:$0x1]
        %v559 = vlaneseq
        %v560 = vshrl.u32 %v559, 7
        %v561 = vsub.s32 0, %v560
        %v562 = vrot.slane %v557, %v561
        %v580 = vunpack.c.l.b16 %v541
        %v581 = vunpack.c.l.b16 %v542
        %v582 = vunpack.c.l.b16 %v543
        %v583 = vunpack.c.l.b16 %v544
        %v584 = vunpack.c.l.b16 %v545
        %v585 = vunpack.c.l.b16 %v546
        %v586 = vunpack.c.l.b16 %v547
        %v587 = vunpack.c.l.b16 %v548
        %v588 = vunpack.c.l.b16 %v549
        %v589 = vunpack.c.l.b16 %v550
        %v590 = vunpack.c.l.b16 %v551
        %v591 = vunpack.c.l.b16 %v552
        %v592 = vunpack.c.l.b16 %v553
        %v593 = vunpack.c.l.b16 %v554
        %v594 = vunpack.c.l.b16 %v555
        %v595 = vunpack.c.l.b16 %v556
        %v596 = vpack.c.b16 %v581, %v580
        %v597 = vpack.c.b16 %v583, %v582
        %v598 = vpack.c.b16 %v585, %v584
        %v599 = vpack.c.b16 %v587, %v586
        %v600 = vpack.c.b16 %v589, %v588
        %v601 = vpack.c.b16 %v591, %v590
        %v602 = vpack.c.b16 %v593, %v592
        %v603 = vpack.c.b16 %v595, %v594
        %612 = vmatprep.subr.bf16.mxu0 0
        %613 = vmatpush1.bf16.msra.mxu0 %v603
        %614 = vmatprep.subr.bf16.mxu0 0
        %615 = vmatpush1.bf16.msra.mxu0 %v602
        %616 = vmatprep.subr.bf16.mxu0 0
        %617 = vmatpush1.bf16.msra.mxu0 %v601
        %618 = vmatprep.subr.bf16.mxu0 0
        %619 = vmatpush1.bf16.msra.mxu0 %v600
        %620 = vmatprep.subr.bf16.mxu0 0
        %621 = vmatpush1.bf16.msra.mxu0 %v599
        %622 = vmatprep.subr.bf16.mxu0 0
        %623 = vmatpush1.bf16.msra.mxu0 %v598
        %624 = vmatprep.subr.bf16.mxu0 0
        %625 = vmatpush1.bf16.msra.mxu0 %v597
        %626 = vmatprep.subr.bf16.mxu0 0
        %627 = vmatpush1.bf16.msra.mxu0 %v596
        %628 = vmatprep.subr.bf16.mxu0 0
        %629 = vmatpush2.bf16.msra.mxu0 0
        %630 = vmatprep.subr.bf16.mxu0 0
        %631 = vmatpush2.bf16.msra.mxu0 0
        %632 = vmatprep.subr.bf16.mxu0 0
        %633 = vmatpush2.bf16.msra.mxu0 0
        %634 = vmatprep.subr.bf16.mxu0 0
        %635 = vmatpush2.bf16.msra.mxu0 0
        %636 = vmatprep.subr.bf16.mxu0 0
        %637 = vmatpush2.bf16.msra.mxu0 0
        %638 = vmatprep.subr.bf16.mxu0 0
        %639 = vmatpush2.bf16.msra.mxu0 0
        %640 = vmatprep.subr.bf16.mxu0 0
        %641 = vmatpush2.bf16.msra.mxu0 0
        %642 = vmatprep.subr.bf16.mxu0 0
        %643 = vmatpush2.bf16.msra.mxu0 0
        %644 = vmatprep.mubr.bf16.mxu0 0
        %645 = vmatmul.mubr.bf16.gmra.mxu0 %v540
        %v646 = vpop.f32.mrf.mxu0
        %v647 = vadd.f32 %v562, %v646
        %v648 = vpop.f32.mrf.mxu0
        %v649 = vpop.f32.mrf.mxu0
        %v650 = vadd.f32 %v562, %v649
        %v651 = vpop.f32.mrf.mxu0
        %652 = vdwg.mxu0
        %v653 = vmax.f32 %v647, 0.0
        %v654 = vmax.f32 %v650, 0.0
        %v655 = vld [vmem:[%s6] sm:$0x1]
        %v657 = vlaneseq
        %v658 = vshrl.u32 %v657, 7
        %v659 = vsub.s32 0, %v658
        %v660 = vrot.slane %v655, %v659
        %v662 = vmul.f32 %v653, %v660
        %v663 = vmul.f32 %v654, %v660
        %664 = vadd.xlane.f32.xlu0 %v662
        %v665 = vpop.xlane.xlu0 %664
        %666 = vadd.xlane.f32.xlu0 %v663
        %v667 = vpop.xlane.xlu0 %666
        %s668 = sld [smem:[#allocation3]]
        %v669 = vstv %s668
        %v670 = vadd.f32 %v665, %v669
        %v671 = vadd.f32 %v667, %v669
        %s672 = ssub.s32 %s455, 1
        %s673 = scalar_select %p463, %s672, %s455
        %v674 = vlaneseq
        %v675 = vshrl.u32 %v674, 7
        %v676 = vadd.s32 %v675, 8
        %s677 = smul.u32 %s673, 16
        %v678 = vstv %s677
        %v679 = vadd.s32 %v675, %v678
        %v680 = vadd.s32 %v676, %v678
        %vm681 = vcmp.lt.s32.totalorder %v679, 16
        %vm682 = vcmp.lt.s32.totalorder %v680, 16
        %v683 = vsel %vm681, 1, 0
        %v684 = vsel %vm682, 1, 0
        %v685 = vcvt.s32.f32 %v683
        %v686 = vcvt.s32.f32 %v684
        %v687 = vmax.f32 %v670, 0.0
        %v688 = vmax.f32 %v671, 0.0
        %v689 = vsel %vm470, %v670, 0.0
        %v690 = vsel %vm470, %v671, 0.0
        %v691 = vsub.f32 %v687, %v689
        %v692 = vsub.f32 %v688, %v690
        %v693 = vand.u32 2147483647, %v670
        %v694 = vand.u32 2147483647, %v671
        %v695 = vsub.f32 0.0, %v693
        %v696 = vsub.f32 0.0, %v694
        %v697 = vmul.f32 %v695, 1.442695
        %v698 = vpow.pop %v697
        %v699 = vmul.f32 %v696, 1.442695
        %v700 = vpow.pop %v699
        %v701 = vadd.f32 %v698, 1.0
        %v702 = vlog2.pop %v701
        %v703 = vmul.f32 %v702, 0.6931472
        %v704 = vmul.f32 -0.5, %v698
        %v705 = vadd.f32 %v704, 1.0
        %v706 = vmul.f32 %v705, %v698
        %v707 = vand.u32 2147483647, %v698
        %vm708 = vcmp.lt.f32.partialorder %v707, 0.0004427343
        %v709 = vsel %vm708, %v706, %v703
        %v710 = vadd.f32 %v700, 1.0
        %v711 = vlog2.pop %v710
        %v712 = vmul.f32 %v711, 0.6931472
        %v713 = vmul.f32 -0.5, %v700
        %v714 = vadd.f32 %v713, 1.0
        %v715 = vmul.f32 %v714, %v700
        %v716 = vand.u32 2147483647, %v700
        %vm717 = vcmp.lt.f32.partialorder %v716, 0.0004427343
        %v718 = vsel %vm717, %v715, %v712
        %v719 = vadd.f32 %v691, %v709
        %v720 = vadd.f32 %v692, %v718
        %v721 = vld [vmem:[#allocation2] sm:$0xff]
        %v722 = vld [vmem:[#allocation2 + $0x8] sm:$0xff]
        %v723 = vmul.f32 %v719, %v685
        %v724 = vmul.f32 %v720, %v686
        %v725 = vadd.f32 %v721, %v723
        %v726 = vadd.f32 %v722, %v724
        %vm727 = vcmask 7168
        %728 = vst.msk [vmem:[#allocation2] sm:$0xff] %vm727, %v725
        %729 = vst.msk [vmem:[#allocation2 + $0x8] sm:$0xff] %vm727, %v726
        %p730 = scmp.eq.s32.totalorder %s33, 1
        // Predicated region
        $region73: #{tpu_custom_call.1} parent=51 // pred_check
          %p731 = pneg %p730
        $region74: #{tpu_custom_call.1} parent=51 // pred_check_branch
          %733 = sbr.rel (%p731) target = $region76
        $region75: #{tpu_custom_call.1} parent=51 // pred_region
          %v734 = vld [vmem:[#allocation2] sm:$0xff]
          %v735 = vld [vmem:[#allocation2 + $0x8] sm:$0xff]
          %v736 = vsel %vm727, %v734, 0.0
          %v737 = vsel %vm727, %v735, 0.0
          %v738 = vadd.f32 %v736, %v737
          %739 = vadd.xlane.f32.xlu0 %v738
          %v740 = vpop.xlane.xlu0 %739
          %v741 = vrot.slane %v740, 4
          %v742 = vadd.f32 %v740, %v741
          %v743 = vrot.slane %v742, 2
          %v744 = vadd.f32 %v742, %v743
          %v745 = vrot.slane %v744, 1
          %v746 = vadd.f32 %v744, %v745
          %s747 = vtos %v746
          %v748 = vstv %s747
          %749 = vst [vmem:[#allocation12] sm:$0xff] %v748
        $region76: #{tpu_custom_call.1} parent=51 // pred_fallthru
          _
        // Predicated region
        $region77: #{tpu_custom_call.1} parent=51 // pred_check
          %p750 = pneg %p262
        $region78: #{tpu_custom_call.1} parent=51 // pred_check_branch
          %752 = sbr.rel (%p750) target = $region80
        $region79: #{tpu_custom_call.1} parent=51 // pred_region
          %s754 = ssub.s32 128, 128
          %755 = vsyncadd [#allocation6], %s754
          %s756 = smul.addr %s32, 128
          %s757 = scalar_lea.hbm %s8, %s756
          %s759 = sshll.u32 [#allocation12], 4
          %s760 = int_to_ptr.vmem [resolvable:$true] %s759
          %762 = dma.vmem_to_hbm [thread:$0]  %s760, 128, %s757, [#allocation6]
        $region80: #{tpu_custom_call.1} parent=51 // pred_fallthru
          _
        // Predicated region
        $region81: #{tpu_custom_call.1} parent=51 // pred_check
          %p763 = pneg %p262
        $region82: #{tpu_custom_call.1} parent=51 // pred_check_branch
          %765 = sbr.rel (%p763) target = $region84
        $region83: #{tpu_custom_call.1} parent=51 // pred_region
          %766 = dma.done [#allocation6], 128
        $region84: #{tpu_custom_call.1} parent=51 // pred_fallthru
          _
      $region52: #{tpu_custom_call.1} parent=5 // pred_fallthru
        _
      %p767 = scmp.le.s32.totalorder 2, %s23
      // Predicated region
      $region85: #{tpu_custom_call.1} parent=5 // pred_check
        %p768 = pneg %p767
      $region86: #{tpu_custom_call.1} parent=5 // pred_check_branch
        %770 = sbr.rel (%p768) target = $region88
      $region87: #{tpu_custom_call.1} parent=5 // pred_region
        %s771 = ssub.s32 %s23, 2
      $region88: #{tpu_custom_call.1} parent=5 // pred_fallthru
        _
    $region6: #{tpu_custom_call.1} parent=1 // loop_footer
      %s27 = sadd.s32 1, %s23
    $region7: #{tpu_custom_call.1} parent=1 // loop_footer_branch
      %22 = sbr.rel target = $region3
    $region8: #{tpu_custom_call.1} parent=1 // loop_exit
      _
    %772 = vsyncpa [#allocation5], 1
    %s773 = scalar_lea.sflag [#allocation5], 1
    %774 = vsyncpa %s773, 1
    %775 = vsyncpa [#allocation8], 1
    %s776 = scalar_lea.sflag [#allocation8], 1
    %777 = vsyncpa %s776, 1
    %778 = vsyncpa [#allocation11], 1
    %779 = vsyncpa [#allocation6], 1
    %s780 = scalar_lea.sflag [#allocation6], 1
    %781 = vsyncpa %s780, 1

</llo_original>
